<compile_context>
chip_gen: v7x
topology: tpu7x:2x2x1
jax: 0.10.0
libtpu: 0.0.40
codegen_flags: <defaults>
</compile_context>

<pallas_src>
import numpy as np
import jax
import jax.numpy as jnp
from jax.experimental import pallas as pl
from jax.experimental.pallas import tpu as pltpu


def frame_fuse_kernel(x_ref, w_ref, o_ref):
    """out[b, n] = sum_t w[t] * x[b, t, n]   (Conv3d(16->1, k=1, bias=False))."""
    x = x_ref[...].astype(jnp.float32)                 # (B, T, tn)
    w = w_ref[...].astype(jnp.float32)[None, :, :]     # (1, T, 1) broadcast
    o_ref[...] = jnp.sum(x * w, axis=1).astype(o_ref.dtype)


def prepare_frame_weights(conv3d_weight):
    """Hoisted out of the per-call path: nn.Conv3d(16,1,1,bias=False).weight
    [1, T, 1, 1, 1] -> column vector [T, 1] in f32 (done once at init)."""
    t = conv3d_weight.shape[1]
    return jnp.asarray(conv3d_weight, jnp.float32).reshape(t, 1)


def frame_fuse(x_btn, w_col, *, out_dtype=None):
    """x_btn: [B, T, N] layer2 features (N = C*H*W), w_col: [T, 1] weights.
    Returns [B, N] = weighted sum over the T (frame) axis."""
    B, T, N = x_btn.shape
    assert w_col.shape == (T, 1), w_col.shape
    out_dtype = x_btn.dtype if out_dtype is None else out_dtype
    in_item = np.dtype(x_btn.dtype).itemsize
    out_item = np.dtype(out_dtype).itemsize

    # --- Generation-aware VMEM budget (perf feedback) -----------------------
    try:
        vmem_cap = int(getattr(pltpu.get_tpu_info(), "vmem_capacity_bytes",
                               64 * 2 ** 20))
    except Exception:  # defensive: fall back to the smallest (v7x) capacity
        vmem_cap = 64 * 2 ** 20
    vmem_soft_cap = int(vmem_cap * 0.8)   # never request full physical VMEM

    # --- Lane tile: a multiple of 128 that divides N exactly ----------------
    # Larger tiles on 128-MiB-VMEM chips (v5e/v6e); keep >= 4 grid steps when
    # possible so ("parallel",) gives both TensorCores work (v7x / megacore).
    tn_target = 4096 if vmem_cap >= 96 * 2 ** 20 else 2048
    cands = [d for d in range(128, N + 1, 128) if N % d == 0] or [N]
    tile_budget = vmem_soft_cap // 4      # budget for the double-buffered x tile
    ok = [d for d in cands
          if d <= tn_target and 2 * B * T * in_item * d <= tile_budget]
    ok = ok or [min(cands)]
    pref = [d for d in ok if N // d >= 4]
    tn = max(pref) if pref else max(ok)
    grid = (N // tn,)

    vmem_need = (2 * B * T * tn * in_item     # double-buffered feature tiles
                 + 2 * B * tn * out_item      # double-buffered output tiles
                 + 8 * 128 * 4)               # single-buffered (padded) weight tile
    vmem_limit = int(min(max(2 * vmem_need, 32 * 2 ** 20), vmem_soft_cap))

    cost = pl.CostEstimate(
        flops=2 * B * T * N,
        transcendentals=0,
        bytes_accessed=B * T * N * in_item + T * 4 + B * N * out_item,
    )

    def _call(single_buffer_weights):
        if single_buffer_weights:
            # Grid-invariant operand: no point double-buffering it (feedback #1).
            w_spec = pl.BlockSpec((T, 1), lambda j: (0, 0),
                                  pipeline_mode=pl.Buffered(buffer_count=1))
        else:
            w_spec = pl.BlockSpec((T, 1), lambda j: (0, 0))
        return pl.pallas_call(
            frame_fuse_kernel,
            out_shape=jax.ShapeDtypeStruct((B, N), out_dtype),
            grid_spec=pltpu.PrefetchScalarGridSpec(
                num_scalar_prefetch=0,
                grid=grid,
                in_specs=[
                    pl.BlockSpec((B, T, tn), lambda j: (0, 0, j)),  # features
                    w_spec,                                         # weights
                ],
                out_specs=pl.BlockSpec((B, tn), lambda j: (0, j)),
            ),
            compiler_params=pltpu.CompilerParams(
                dimension_semantics=("parallel",),
                vmem_limit_bytes=vmem_limit,
            ),
            cost_estimate=cost,
        )(x_btn, w_col)

    try:
        return _call(True)
    except Exception:
        # TODO(synk): jax builds without BlockSpec.pipeline_mode / pl.Buffered;
        # fall back to default double buffering (one extra tiny weight buffer).
        return _call(False)


def fea_layer2_forward(fea_layer2_40, fea_layer2_10, fea_layer2_down10, w_col,
                       *, batch, out_dtype=None):
    """Pallas version of Fea_Layer2.forward downstream of the (untranslatable)
    pretrained ResNet34 'layer2' feature extractor.

      fea_layer2_40 : [B*T, C, H, W]  layer2 features of the T=16 40x patches
      fea_layer2_10, fea_layer2_down10 : pass-through branch features
      w_col         : [T, 1] prepared Conv3d(16, 1, k=1, bias=False) weight

    Returns (f_layer2_40 [B, C, H, W], fea_layer2_10, fea_layer2_down10).
    """
    T = w_col.shape[0]
    BT, C, H, W = fea_layer2_40.shape
    assert BT == batch * T, (BT, batch, T)
    # Contiguous reshape only (no data movement): [B*T,C,H,W] -> [B,T,C*H*W].
    x_btn = fea_layer2_40.reshape(batch, T, C * H * W)
    fused = frame_fuse(x_btn, w_col, out_dtype=out_dtype)   # [B, C*H*W]
    f_layer2_40 = fused.reshape(batch, C, H, W)
    # The 10x / down-10x branches are returned unchanged by the module.
    return f_layer2_40, fea_layer2_10, fea_layer2_down10


if __name__ == "__main__":
    # Small shapes consistent with the module: x_40 is [B, T=16, 3, h, w] and
    # ResNet34 'layer2' maps each 3xhxw patch to [128, h/8, w/8].  Use B = 2
    # and an 8x8 layer2 spatial grid (i.e. 64x64 input patches).
    B, T, C, H, W = 2, 16, 128, 8, 8

    key = jax.random.PRNGKey(0)
    k_40, k_10, k_d10, k_w = jax.random.split(key, 4)

    # Stand-ins for the pretrained-ResNet34 layer2 feature maps (see TODO).
    fea_layer2_40 = jax.random.normal(k_40, (B * T, C, H, W), jnp.float32)
    fea_layer2_10 = jax.random.normal(k_10, (B, C, H, W), jnp.float32)
    fea_layer2_down10 = jax.random.normal(k_d10, (B, C, H, W), jnp.float32)
    # nn.Conv3d(16, 1, kernel_size=1, stride=1, padding=0, bias=False).weight
    conv_w = jax.random.normal(k_w, (1, T, 1, 1, 1), jnp.float32) * 0.25

    w_col = prepare_frame_weights(conv_w)         # hoisted out of the hot path

    f_40, f_10, f_d10 = fea_layer2_forward(
        fea_layer2_40, fea_layer2_10, fea_layer2_down10, w_col, batch=B)
    jax.block_until_ready(f_40)

    assert f_40.shape == (B, C, H, W), f_40.shape
    assert f_10.shape == fea_layer2_10.shape
    assert f_d10.shape == fea_layer2_down10.shape

    # Pure-JAX reference for Conv3d(16->1, k=1, bias=False) + squeeze(dim=1).
    ref = jnp.einsum("t,btchw->bchw",
                     conv_w.reshape(T),
                     fea_layer2_40.reshape(B, T, C, H, W))
    max_err = float(jnp.max(jnp.abs(f_40 - ref)))
    assert jnp.allclose(f_40, ref, atol=1e-4, rtol=1e-4), max_err

    print("KERNEL_OK")
</pallas_src>

<mosaic_0001>
module attributes {stable_mosaic.version = 11 : i64} {
  func.func @frame_fuse_kernel(%arg0: i32, %arg1: memref<2x16x2048xf32, #tpu.memory_space<vmem>>, %arg2: memref<16x1xf32, #tpu.memory_space<vmem>>, %arg3: memref<2x2048xf32, #tpu.memory_space<vmem>>) attributes {dimension_semantics = [#tpu.dimension_semantics<parallel>], iteration_bounds = array<i64: 4>, scalar_prefetch = 0 : i64, scratch_operands = 0 : i64, tpu.core_type = #tpu.core_type<tc>, window_params = [{transform_indices = @transform_0, window_bounds = array<i64: 2, 16, 2048>}, {pipeline_mode = #tpu.pipeline_mode<synchronous>, transform_indices = @transform_1, window_bounds = array<i64: 16, 1>}, {transform_indices = @transform_2, window_bounds = array<i64: 2, 2048>}]} {
    %c0 = arith.constant 0 : index
    %c0_0 = arith.constant 0 : index
    %c0_1 = arith.constant 0 : index
    %0 = vector.load %arg1[%c0, %c0_0, %c0_1] : memref<2x16x2048xf32, #tpu.memory_space<vmem>>, vector<2x16x2048xf32>
    %c0_2 = arith.constant 0 : index
    %c0_3 = arith.constant 0 : index
    %1 = vector.load %arg2[%c0_2, %c0_3] : memref<16x1xf32, #tpu.memory_space<vmem>>, vector<16x1xf32>
    %2 = vector.shape_cast %1 : vector<16x1xf32> to vector<1x16x1xf32>
    %3 = vector.broadcast %2 : vector<1x16x1xf32> to vector<2x16x2048xf32>
    %4 = arith.mulf %0, %3 : vector<2x16x2048xf32>
    %cst = arith.constant dense<0.000000e+00> : vector<2x2048xf32>
    %5 = vector.multi_reduction <add>, %4, %cst [1] : vector<2x16x2048xf32> to vector<2x2048xf32>
    %c0_4 = arith.constant 0 : index
    %c0_5 = arith.constant 0 : index
    %6 = vector.load %arg3[%c0_4, %c0_5] : memref<2x2048xf32, #tpu.memory_space<vmem>>, vector<2x2048xf32>
    tpu.vector_store %arg3[%c0_4, %c0_5], %5 {strides = array<i32>} : memref<2x2048xf32, #tpu.memory_space<vmem>>, vector<2x2048xf32>,
    return
  }
  func.func @transform_0(%arg0: i32) -> (i32, i32, i32) {
    %c0_i32 = arith.constant 0 : i32
    %c0_i32_0 = arith.constant 0 : i32
    %c0_i32_1 = arith.constant 0 : i32
    return %c0_i32, %c0_i32_0, %arg0 : i32, i32, i32
  }
  func.func @transform_1(%arg0: i32) -> (i32, i32) {
    %c0_i32 = arith.constant 0 : i32
    %c0_i32_0 = arith.constant 0 : i32
    %c0_i32_1 = arith.constant 0 : i32
    return %c0_i32, %c0_i32_0 : i32, i32
  }
  func.func @transform_2(%arg0: i32) -> (i32, i32) {
    %c0_i32 = arith.constant 0 : i32
    %c0_i32_0 = arith.constant 0 : i32
    return %c0_i32, %arg0 : i32, i32
  }
}

module attributes {stable_mosaic.version = 11 : i64} {
  func.func @frame_fuse_kernel(%arg0: i32, %arg1: memref<2x16x2048xf32, #tpu.memory_space<vmem>>, %arg2: memref<16x1xf32, #tpu.memory_space<vmem>>, %arg3: memref<2x2048xf32, #tpu.memory_space<vmem>>) attributes {dimension_semantics = [#tpu.dimension_semantics<parallel>], iteration_bounds = array<i64: 4>, scalar_prefetch = 0 : i64, scratch_operands = 0 : i64, tpu.core_type = #tpu.core_type<tc>, window_params = [{transform_indices = @transform_0, window_bounds = array<i64: 2, 16, 2048>}, {pipeline_mode = #tpu.pipeline_mode<synchronous>, transform_indices = @transform_1, window_bounds = array<i64: 16, 1>}, {transform_indices = @transform_2, window_bounds = array<i64: 2, 2048>}]} {
    %c0 = arith.constant 0 : index
    %c0_0 = arith.constant 0 : index
    %c0_1 = arith.constant 0 : index
    %0 = vector.load %arg1[%c0, %c0_0, %c0_1] : memref<2x16x2048xf32, #tpu.memory_space<vmem>>, vector<2x16x2048xf32>
    %c0_2 = arith.constant 0 : index
    %c0_3 = arith.constant 0 : index
    %1 = vector.load %arg2[%c0_2, %c0_3] : memref<16x1xf32, #tpu.memory_space<vmem>>, vector<16x1xf32>
    %2 = vector.shape_cast %1 : vector<16x1xf32> to vector<1x16x1xf32>
    %3 = vector.broadcast %2 : vector<1x16x1xf32> to vector<2x16x2048xf32>
    %4 = arith.mulf %0, %3 : vector<2x16x2048xf32>
    %cst = arith.constant dense<0.000000e+00> : vector<2x2048xf32>
    %5 = vector.multi_reduction <add>, %4, %cst [1] : vector<2x16x2048xf32> to vector<2x2048xf32>
    %c0_4 = arith.constant 0 : index
    %c0_5 = arith.constant 0 : index
    %6 = vector.load %arg3[%c0_4, %c0_5] : memref<2x2048xf32, #tpu.memory_space<vmem>>, vector<2x2048xf32>
    tpu.vector_store %arg3[%c0_4, %c0_5], %5 {strides = array<i32>} : memref<2x2048xf32, #tpu.memory_space<vmem>>, vector<2x2048xf32>,
    return
  }
  func.func @transform_0(%arg0: i32) -> (i32, i32, i32) {
    %c0_i32 = arith.constant 0 : i32
    %c0_i32_0 = arith.constant 0 : i32
    %c0_i32_1 = arith.constant 0 : i32
    return %c0_i32, %c0_i32_0, %arg0 : i32, i32, i32
  }
  func.func @transform_1(%arg0: i32) -> (i32, i32) {
    %c0_i32 = arith.constant 0 : i32
    %c0_i32_0 = arith.constant 0 : i32
    %c0_i32_1 = arith.constant 0 : i32
    return %c0_i32, %c0_i32_0 : i32, i32
  }
  func.func @transform_2(%arg0: i32) -> (i32, i32) {
    %c0_i32 = arith.constant 0 : i32
    %c0_i32_0 = arith.constant 0 : i32
    return %c0_i32, %arg0 : i32, i32
  }
}

</mosaic_0001>

<llo_original>
// kernel: tpu_custom_call.1
$region0: #{tpu_custom_call.1}
  #allocation0 [shape = 'u32[]', space=smem, size = 0x4, offset = 0x4, fixed_abs, tag = 'smem constant byte address 0x4 - core index']
  #allocation1 [shape = 'u32[144,128]{1,0:T(1,128)}', space=vmem, size = 0x12000, scoped, tag = 'internal scratch']
  %s0 = inlined_call_operand.hbm [shape: f32[2,16,8192], index: 0, kind: input, shape index: {}]
  %s1 = inlined_call_operand.vmem [shape: f32[16,1], index: 1, kind: input, shape index: {}]
  %s2 = inlined_call_operand.hbm [shape: f32[2,8192], index: 2, kind: output, shape index: {}]
  %s3 = sld [smem:[#allocation0]]
  $region45: #{tpu_custom_call.1} parent=0
    _
  %s5 = ssub.s32 1, %s3
  %s6 = scalar_select 0, %s5, %s3
  $region1: #{tpu_custom_call.1} parent=0
    #allocation2 [shape = 'u8[524288]{0}', space=vmem, size = 0x80000, scoped, tag = 'input window, operand 0']
    #allocation3 [shape = 's32[2]{0}', space=sflag, size = 0x8, scoped, tag = 'scoped memory for tpu_custom_call.1']
    #allocation4 [shape = 's32[2]{0}', space=sflag, size = 0x8, scoped, tag = 'scoped memory for tpu_custom_call.1']
    #allocation5 [shape = 'u8[32768]{0}', space=vmem, size = 0x8000, scoped, tag = 'output window, operand 0']
    %7 = vsyncpa [#allocation3], 0
    %s8 = scalar_lea.sflag [#allocation3], 1
    %9 = vsyncpa %s8, 0
    %10 = vsyncpa [#allocation4], 0
    %s11 = scalar_lea.sflag [#allocation4], 1
    %12 = vsyncpa %s11, 0
    loop: start=0, step=1, limit=6
    $region2: #{tpu_custom_call.1} parent=1 // loop_pre_header
      _
    $region3: #{tpu_custom_call.1} parent=1 // loop_header
      %s14 = sphi 0, %s18
      %p15 = scmp.ge.s32.totalorder %s14, 6
      %s24 = sphi 0, %s26
      %s27 = sphi 0, %s24
      %s28 = sphi 0, %s27
      %s44 = sphi 0, %s28
      %s48 = sphi 0, %s48
      %s50 = sphi 0, %s48
      %s51 = sphi 0, %s50
      %s65 = sphi 0, %s51
      %s71 = sphi 0, %s73
      %s74 = sphi 0, %s71
      %s75 = sphi 0, %s74
      %s91 = sphi 0, %s75
    $region4: #{tpu_custom_call.1} parent=1 // loop_header_branch
      %17 = sbr.rel (%p15) target = $region8
    $region5: #{tpu_custom_call.1} parent=1 // loop_body
      %s19 = ssub.s32 %s14, 1
      %s20 = ssub.s32 %s14, 2
      %s21 = sadd.s32 %s14, 1
      %s22 = ssub.s32 %s14, %s21
      %p23 = scmp.eq.s32.totalorder %s22, 0
      %s25 = sadd.s32 %s24, 1
      %s26 = scalar_select %p23, %s24, %s25
      %p29 = pneg %p23
      %p30 = scmp.eq.s32.totalorder %s14, 3
      %p31 = por %p29, %p30
      %p32 = scmp.ne.s32.totalorder %s24, %s27
      %p33 = scmp.eq.s32.totalorder %s14, 0
      %p34 = por %p32, %p33
      %p35 = scmp.ne.s32.totalorder %s24, %s27
      %p36 = scmp.eq.s32.totalorder %s19, 3
      %p37 = por %p35, %p36
      %p38 = scmp.ne.s32.totalorder %s27, %s28
      %p39 = scmp.eq.s32.totalorder %s19, 0
      %p40 = por %p38, %p39
      %p41 = scmp.ne.s32.totalorder %s27, %s28
      %p42 = scmp.eq.s32.totalorder %s20, 3
      %p43 = por %p41, %p42
      %p45 = scmp.ne.s32.totalorder %s28, %s44
      %p46 = scmp.eq.s32.totalorder %s20, 0
      %p47 = por %p45, %p46
      %s49 = sadd.s32 %s48, 1
      %p52 = scmp.eq.s32.totalorder %s14, 3
      %p53 = scmp.ne.s32.totalorder %s48, %s50
      %p54 = scmp.eq.s32.totalorder %s14, 0
      %p55 = por %p53, %p54
      %p56 = scmp.ne.s32.totalorder %s48, %s50
      %p57 = scmp.eq.s32.totalorder %s19, 3
      %p58 = por %p56, %p57
      %p59 = scmp.ne.s32.totalorder %s50, %s51
      %p60 = scmp.eq.s32.totalorder %s19, 0
      %p61 = por %p59, %p60
      %p62 = scmp.ne.s32.totalorder %s50, %s51
      %p63 = scmp.eq.s32.totalorder %s20, 3
      %p64 = por %p62, %p63
      %p66 = scmp.ne.s32.totalorder %s51, %s65
      %p67 = scmp.eq.s32.totalorder %s20, 0
      %p68 = por %p66, %p67
      %s69 = ssub.s32 %s14, %s21
      %p70 = scmp.eq.s32.totalorder %s69, 0
      %s72 = sadd.s32 %s71, 1
      %s73 = scalar_select %p70, %s71, %s72
      %p76 = pneg %p70
      %p77 = scmp.eq.s32.totalorder %s14, 3
      %p78 = por %p76, %p77
      %p79 = scmp.ne.s32.totalorder %s71, %s74
      %p80 = scmp.eq.s32.totalorder %s14, 0
      %p81 = por %p79, %p80
      %p82 = scmp.ne.s32.totalorder %s71, %s74
      %p83 = scmp.eq.s32.totalorder %s19, 3
      %p84 = por %p82, %p83
      %p85 = scmp.ne.s32.totalorder %s74, %s75
      %p86 = scmp.eq.s32.totalorder %s19, 0
      %p87 = por %p85, %p86
      %p88 = scmp.ne.s32.totalorder %s74, %s75
      %p89 = scmp.eq.s32.totalorder %s20, 3
      %p90 = por %p88, %p89
      %p92 = scmp.ne.s32.totalorder %s75, %s91
      %p93 = scmp.eq.s32.totalorder %s20, 0
      %p94 = por %p92, %p93
      %p95 = scmp.le.s32.totalorder 1, %s14
      %p96 = scmp.lt.s32.totalorder %s14, 5
      %p97 = pnand %p95, %p96
      %p98 = pneg %p97
      // Predicated region
      $region9: #{tpu_custom_call.1} parent=5 // pred_check
        _
      $region10: #{tpu_custom_call.1} parent=5 // pred_check_branch
        %100 = sbr.rel (%p97) target = $region12
      $region11: #{tpu_custom_call.1} parent=5 // pred_region
        %s101 = ssub.s32 %s14, 1
        // Predicated region
        $region13: #{tpu_custom_call.1} parent=11 // pred_check
          %p102 = pneg %p61
        $region14: #{tpu_custom_call.1} parent=11 // pred_check_branch
          %104 = sbr.rel (%p102) target = $region16
        $region15: #{tpu_custom_call.1} parent=11 // pred_region
          _
        $region16: #{tpu_custom_call.1} parent=11 // pred_fallthru
          _
      $region12: #{tpu_custom_call.1} parent=5 // pred_fallthru
        _
      %p105 = scmp.lt.s32.totalorder %s14, 4
      // Predicated region
      $region17: #{tpu_custom_call.1} parent=5 // pred_check
        %p106 = pneg %p105
      $region18: #{tpu_custom_call.1} parent=5 // pred_check_branch
        %108 = sbr.rel (%p106) target = $region20
      $region19: #{tpu_custom_call.1} parent=5 // pred_region
        // Predicated region
        $region21: #{tpu_custom_call.1} parent=19 // pred_check
          %p109 = pneg %p34
        $region22: #{tpu_custom_call.1} parent=19 // pred_check_branch
          %111 = sbr.rel (%p109) target = $region24
        $region23: #{tpu_custom_call.1} parent=19 // pred_region
          %s112 = sand.u32 %s24, 1
          %s113 = scalar_lea.sflag [#allocation3], %s112
          %s114 = sand.u32 %s24, 1
          %s115 = smul.addr %s114, 512
          %s116 = scalar_lea.vmem [#allocation2], %s115
          %s117 = smul.u32 16, %s14
          %s119 = ssub.s32 8192, 8192
          %120 = vsyncadd %s113, %s119
          %s121 = smul.addr %s117, 128
          %s122 = scalar_lea.hbm %s0, %s121
          %s123 = sshll.u32 %s116, 4
          %s124 = int_to_ptr.vmem [resolvable:$true] %s123
          %129 = dma.hbm_to_vmem [thread:$0]  %s122, 8192, %s124, %s113, 8192, 2048, 128
        $region24: #{tpu_custom_call.1} parent=19 // pred_fallthru
          _
      $region20: #{tpu_custom_call.1} parent=5 // pred_fallthru
        _
      %p130 = scmp.le.s32.totalorder 1, %s14
      %p131 = scmp.lt.s32.totalorder %s14, 5
      %p132 = pnand %p130, %p131
      %p133 = pneg %p132
      // Predicated region
      $region25: #{tpu_custom_call.1} parent=5 // pred_check
        _
      $region26: #{tpu_custom_call.1} parent=5 // pred_check_branch
        %135 = sbr.rel (%p132) target = $region28
      $region27: #{tpu_custom_call.1} parent=5 // pred_region
        %s136 = ssub.s32 %s14, 1
        %s137 = sand.u32 %s27, 1
        %s138 = scalar_lea.sflag [#allocation3], %s137
        %s139 = sand.u32 %s27, 1
        %s140 = smul.addr %s139, 512
        %s141 = scalar_lea.vmem [#allocation2], %s140
        // Predicated region
        $region29: #{tpu_custom_call.1} parent=27 // pred_check
          %p142 = pneg %p40
        $region30: #{tpu_custom_call.1} parent=27 // pred_check_branch
          %144 = sbr.rel (%p142) target = $region32
        $region31: #{tpu_custom_call.1} parent=27 // pred_region
          %145 = dma.done %s138, 8192
        $region32: #{tpu_custom_call.1} parent=27 // pred_fallthru
          _
        %s146 = sand.u32 %s27, 1
        %s147 = scalar_lea.sflag [#allocation3], %s146
        %s148 = sand.u32 %s27, 1
        %s149 = smul.addr %s148, 512
        %s150 = scalar_lea.vmem [#allocation2], %s149
        %p151 = pneg %p40
        %p152 = pneg %p37
        %p153 = pneg %p61
        %p154 = pneg %p58
        %p155 = pneg %p87
        %p156 = pneg %p84
        %s157 = sand.u32 %s74, 1
        %s158 = scalar_lea.sflag [#allocation4], %s157
        %s159 = sand.u32 %s74, 1
        %s160 = smul.addr %s159, 32
        %s161 = scalar_lea.vmem [#allocation5], %s160
        %s162 = smul.u32 16, %s19
        %s163 = smul.u32 16, %s19
        %v164 = vld [vmem:[%s141] sm:$0xff]
        %v165 = vld [vmem:[%s141 + $0x8] sm:$0xff]
        %v166 = vld [vmem:[%s141 + $0x10] sm:$0xff]
        %v167 = vld [vmem:[%s141 + $0x18] sm:$0xff]
        %v168 = vld [vmem:[%s141 + $0x20] sm:$0xff]
        %v169 = vld [vmem:[%s141 + $0x28] sm:$0xff]
        %v170 = vld [vmem:[%s141 + $0x30] sm:$0xff]
        %v171 = vld [vmem:[%s141 + $0x38] sm:$0xff]
        %v172 = vld [vmem:[%s141 + $0x40] sm:$0xff]
        %v173 = vld [vmem:[%s141 + $0x48] sm:$0xff]
        %v174 = vld [vmem:[%s141 + $0x50] sm:$0xff]
        %v175 = vld [vmem:[%s141 + $0x58] sm:$0xff]
        %v176 = vld [vmem:[%s141 + $0x60] sm:$0xff]
        %v177 = vld [vmem:[%s141 + $0x68] sm:$0xff]
        %v178 = vld [vmem:[%s141 + $0x70] sm:$0xff]
        %v179 = vld [vmem:[%s141 + $0x78] sm:$0xff]
        %v180 = vld [vmem:[%s141 + $0x80] sm:$0xff]
        %v181 = vld [vmem:[%s141 + $0x88] sm:$0xff]
        %v182 = vld [vmem:[%s141 + $0x90] sm:$0xff]
        %v183 = vld [vmem:[%s141 + $0x98] sm:$0xff]
        %v184 = vld [vmem:[%s141 + $0xa0] sm:$0xff]
        %v185 = vld [vmem:[%s141 + $0xa8] sm:$0xff]
        %v186 = vld [vmem:[%s141 + $0xb0] sm:$0xff]
        %v187 = vld [vmem:[%s141 + $0xb8] sm:$0xff]
        %v188 = vld [vmem:[%s141 + $0xc0] sm:$0xff]
        %v189 = vld [vmem:[%s141 + $0xc8] sm:$0xff]
        %v190 = vld [vmem:[%s141 + $0xd0] sm:$0xff]
        %v191 = vld [vmem:[%s141 + $0xd8] sm:$0xff]
        %v192 = vld [vmem:[%s141 + $0xe0] sm:$0xff]
        %v193 = vld [vmem:[%s141 + $0xe8] sm:$0xff]
        %v194 = vld [vmem:[%s141 + $0xf0] sm:$0xff]
        %v195 = vld [vmem:[%s141 + $0xf8] sm:$0xff]
        %v196 = vld [vmem:[%s141 + $0x100] sm:$0xff]
        %v197 = vld [vmem:[%s141 + $0x108] sm:$0xff]
        %v198 = vld [vmem:[%s141 + $0x110] sm:$0xff]
        %v199 = vld [vmem:[%s141 + $0x118] sm:$0xff]
        %v200 = vld [vmem:[%s141 + $0x120] sm:$0xff]
        %v201 = vld [vmem:[%s141 + $0x128] sm:$0xff]
        %v202 = vld [vmem:[%s141 + $0x130] sm:$0xff]
        %v203 = vld [vmem:[%s141 + $0x138] sm:$0xff]
        %v204 = vld [vmem:[%s141 + $0x140] sm:$0xff]
        %v205 = vld [vmem:[%s141 + $0x148] sm:$0xff]
        %v206 = vld [vmem:[%s141 + $0x150] sm:$0xff]
        %v207 = vld [vmem:[%s141 + $0x158] sm:$0xff]
        %v208 = vld [vmem:[%s141 + $0x160] sm:$0xff]
        %v209 = vld [vmem:[%s141 + $0x168] sm:$0xff]
        %v210 = vld [vmem:[%s141 + $0x170] sm:$0xff]
        %v211 = vld [vmem:[%s141 + $0x178] sm:$0xff]
        %v212 = vld [vmem:[%s141 + $0x180] sm:$0xff]
        %v213 = vld [vmem:[%s141 + $0x188] sm:$0xff]
        %v214 = vld [vmem:[%s141 + $0x190] sm:$0xff]
        %v215 = vld [vmem:[%s141 + $0x198] sm:$0xff]
        %v216 = vld [vmem:[%s141 + $0x1a0] sm:$0xff]
        %v217 = vld [vmem:[%s141 + $0x1a8] sm:$0xff]
        %v218 = vld [vmem:[%s141 + $0x1b0] sm:$0xff]
        %v219 = vld [vmem:[%s141 + $0x1b8] sm:$0xff]
        %v220 = vld [vmem:[%s141 + $0x1c0] sm:$0xff]
        %v221 = vld [vmem:[%s141 + $0x1c8] sm:$0xff]
        %v222 = vld [vmem:[%s141 + $0x1d0] sm:$0xff]
        %v223 = vld [vmem:[%s141 + $0x1d8] sm:$0xff]
        %v224 = vld [vmem:[%s141 + $0x1e0] sm:$0xff]
        %v225 = vld [vmem:[%s141 + $0x1e8] sm:$0xff]
        %v226 = vld [vmem:[%s141 + $0x1f0] sm:$0xff]
        %v227 = vld [vmem:[%s141 + $0x1f8] sm:$0xff]
        %v228 = vld [vmem:[%s1] sm:$0xff]
        %v229 = vld [vmem:[%s1 + $0x8] sm:$0xff]
        %231 = vset.pattern.permute.xlu0 0
        %232 = vperm.xlu0 %231, %v228
        %v233 = vpop.permute.xlu0 %232
        %236 = vset.pattern.permute.xlu0 0
        %237 = vperm.xlu0 %236, %v229
        %v238 = vpop.permute.xlu0 %237
        %v240 = vmul.f32 %v164, %v233
        %v241 = vmul.f32 %v165, %v233
        %v242 = vmul.f32 %v166, %v233
        %v243 = vmul.f32 %v167, %v233
        %v244 = vmul.f32 %v168, %v233
        %v245 = vmul.f32 %v169, %v233
        %v246 = vmul.f32 %v170, %v233
        %v247 = vmul.f32 %v171, %v233
        %v248 = vmul.f32 %v172, %v233
        %v249 = vmul.f32 %v173, %v233
        %v250 = vmul.f32 %v174, %v233
        %v251 = vmul.f32 %v175, %v233
        %v252 = vmul.f32 %v176, %v233
        %v253 = vmul.f32 %v177, %v233
        %v254 = vmul.f32 %v178, %v233
        %v255 = vmul.f32 %v179, %v233
        %v256 = vmul.f32 %v180, %v238
        %v257 = vmul.f32 %v181, %v238
        %v258 = vmul.f32 %v182, %v238
        %v259 = vmul.f32 %v183, %v238
        %v260 = vmul.f32 %v184, %v238
        %v261 = vmul.f32 %v185, %v238
        %v262 = vmul.f32 %v186, %v238
        %v263 = vmul.f32 %v187, %v238
        %v264 = vmul.f32 %v188, %v238
        %v265 = vmul.f32 %v189, %v238
        %v266 = vmul.f32 %v190, %v238
        %v267 = vmul.f32 %v191, %v238
        %v268 = vmul.f32 %v192, %v238
        %v269 = vmul.f32 %v193, %v238
        %v270 = vmul.f32 %v194, %v238
        %v271 = vmul.f32 %v195, %v238
        %v272 = vmul.f32 %v196, %v233
        %v273 = vmul.f32 %v197, %v233
        %v274 = vmul.f32 %v198, %v233
        %v275 = vmul.f32 %v199, %v233
        %v276 = vmul.f32 %v200, %v233
        %v277 = vmul.f32 %v201, %v233
        %v278 = vmul.f32 %v202, %v233
        %v279 = vmul.f32 %v203, %v233
        %v280 = vmul.f32 %v204, %v233
        %v281 = vmul.f32 %v205, %v233
        %v282 = vmul.f32 %v206, %v233
        %v283 = vmul.f32 %v207, %v233
        %v284 = vmul.f32 %v208, %v233
        %v285 = vmul.f32 %v209, %v233
        %v286 = vmul.f32 %v210, %v233
        %v287 = vmul.f32 %v211, %v233
        %v288 = vmul.f32 %v212, %v238
        %v289 = vmul.f32 %v213, %v238
        %v290 = vmul.f32 %v214, %v238
        %v291 = vmul.f32 %v215, %v238
        %v292 = vmul.f32 %v216, %v238
        %v293 = vmul.f32 %v217, %v238
        %v294 = vmul.f32 %v218, %v238
        %v295 = vmul.f32 %v219, %v238
        %v296 = vmul.f32 %v220, %v238
        %v297 = vmul.f32 %v221, %v238
        %v298 = vmul.f32 %v222, %v238
        %v299 = vmul.f32 %v223, %v238
        %v300 = vmul.f32 %v224, %v238
        %v301 = vmul.f32 %v225, %v238
        %v302 = vmul.f32 %v226, %v238
        %v303 = vmul.f32 %v227, %v238
        %v304 = vadd.f32 %v240, %v256
        %v305 = vrot.slane %v304, 4
        %v306 = vadd.f32 %v304, %v305
        %v307 = vrot.slane %v306, 2
        %v308 = vadd.f32 %v306, %v307
        %v309 = vrot.slane %v308, 1
        %v310 = vadd.f32 %v308, %v309
        %v311 = vadd.f32 %v241, %v257
        %v312 = vrot.slane %v311, 4
        %v313 = vadd.f32 %v311, %v312
        %v314 = vrot.slane %v313, 2
        %v315 = vadd.f32 %v313, %v314
        %v316 = vrot.slane %v315, 1
        %v317 = vadd.f32 %v315, %v316
        %v318 = vadd.f32 %v242, %v258
        %v319 = vrot.slane %v318, 4
        %v320 = vadd.f32 %v318, %v319
        %v321 = vrot.slane %v320, 2
        %v322 = vadd.f32 %v320, %v321
        %v323 = vrot.slane %v322, 1
        %v324 = vadd.f32 %v322, %v323
        %v325 = vadd.f32 %v243, %v259
        %v326 = vrot.slane %v325, 4
        %v327 = vadd.f32 %v325, %v326
        %v328 = vrot.slane %v327, 2
        %v329 = vadd.f32 %v327, %v328
        %v330 = vrot.slane %v329, 1
        %v331 = vadd.f32 %v329, %v330
        %v332 = vadd.f32 %v244, %v260
        %v333 = vrot.slane %v332, 4
        %v334 = vadd.f32 %v332, %v333
        %v335 = vrot.slane %v334, 2
        %v336 = vadd.f32 %v334, %v335
        %v337 = vrot.slane %v336, 1
        %v338 = vadd.f32 %v336, %v337
        %v339 = vadd.f32 %v245, %v261
        %v340 = vrot.slane %v339, 4
        %v341 = vadd.f32 %v339, %v340
        %v342 = vrot.slane %v341, 2
        %v343 = vadd.f32 %v341, %v342
        %v344 = vrot.slane %v343, 1
        %v345 = vadd.f32 %v343, %v344
        %v346 = vadd.f32 %v246, %v262
        %v347 = vrot.slane %v346, 4
        %v348 = vadd.f32 %v346, %v347
        %v349 = vrot.slane %v348, 2
        %v350 = vadd.f32 %v348, %v349
        %v351 = vrot.slane %v350, 1
        %v352 = vadd.f32 %v350, %v351
        %v353 = vadd.f32 %v247, %v263
        %v354 = vrot.slane %v353, 4
        %v355 = vadd.f32 %v353, %v354
        %v356 = vrot.slane %v355, 2
        %v357 = vadd.f32 %v355, %v356
        %v358 = vrot.slane %v357, 1
        %v359 = vadd.f32 %v357, %v358
        %v360 = vadd.f32 %v248, %v264
        %v361 = vrot.slane %v360, 4
        %v362 = vadd.f32 %v360, %v361
        %v363 = vrot.slane %v362, 2
        %v364 = vadd.f32 %v362, %v363
        %v365 = vrot.slane %v364, 1
        %v366 = vadd.f32 %v364, %v365
        %v367 = vadd.f32 %v249, %v265
        %v368 = vrot.slane %v367, 4
        %v369 = vadd.f32 %v367, %v368
        %v370 = vrot.slane %v369, 2
        %v371 = vadd.f32 %v369, %v370
        %v372 = vrot.slane %v371, 1
        %v373 = vadd.f32 %v371, %v372
        %v374 = vadd.f32 %v250, %v266
        %v375 = vrot.slane %v374, 4
        %v376 = vadd.f32 %v374, %v375
        %v377 = vrot.slane %v376, 2
        %v378 = vadd.f32 %v376, %v377
        %v379 = vrot.slane %v378, 1
        %v380 = vadd.f32 %v378, %v379
        %v381 = vadd.f32 %v251, %v267
        %v382 = vrot.slane %v381, 4
        %v383 = vadd.f32 %v381, %v382
        %v384 = vrot.slane %v383, 2
        %v385 = vadd.f32 %v383, %v384
        %v386 = vrot.slane %v385, 1
        %v387 = vadd.f32 %v385, %v386
        %v388 = vadd.f32 %v252, %v268
        %v389 = vrot.slane %v388, 4
        %v390 = vadd.f32 %v388, %v389
        %v391 = vrot.slane %v390, 2
        %v392 = vadd.f32 %v390, %v391
        %v393 = vrot.slane %v392, 1
        %v394 = vadd.f32 %v392, %v393
        %v395 = vadd.f32 %v253, %v269
        %v396 = vrot.slane %v395, 4
        %v397 = vadd.f32 %v395, %v396
        %v398 = vrot.slane %v397, 2
        %v399 = vadd.f32 %v397, %v398
        %v400 = vrot.slane %v399, 1
        %v401 = vadd.f32 %v399, %v400
        %v402 = vadd.f32 %v254, %v270
        %v403 = vrot.slane %v402, 4
        %v404 = vadd.f32 %v402, %v403
        %v405 = vrot.slane %v404, 2
        %v406 = vadd.f32 %v404, %v405
        %v407 = vrot.slane %v406, 1
        %v408 = vadd.f32 %v406, %v407
        %v409 = vadd.f32 %v255, %v271
        %v410 = vrot.slane %v409, 4
        %v411 = vadd.f32 %v409, %v410
        %v412 = vrot.slane %v411, 2
        %v413 = vadd.f32 %v411, %v412
        %v414 = vrot.slane %v413, 1
        %v415 = vadd.f32 %v413, %v414
        %v416 = vadd.f32 %v272, %v288
        %v417 = vrot.slane %v416, 4
        %v418 = vadd.f32 %v416, %v417
        %v419 = vrot.slane %v418, 2
        %v420 = vadd.f32 %v418, %v419
        %v421 = vrot.slane %v420, 1
        %v422 = vadd.f32 %v420, %v421
        %v423 = vadd.f32 %v273, %v289
        %v424 = vrot.slane %v423, 4
        %v425 = vadd.f32 %v423, %v424
        %v426 = vrot.slane %v425, 2
        %v427 = vadd.f32 %v425, %v426
        %v428 = vrot.slane %v427, 1
        %v429 = vadd.f32 %v427, %v428
        %v430 = vadd.f32 %v274, %v290
        %v431 = vrot.slane %v430, 4
        %v432 = vadd.f32 %v430, %v431
        %v433 = vrot.slane %v432, 2
        %v434 = vadd.f32 %v432, %v433
        %v435 = vrot.slane %v434, 1
        %v436 = vadd.f32 %v434, %v435
        %v437 = vadd.f32 %v275, %v291
        %v438 = vrot.slane %v437, 4
        %v439 = vadd.f32 %v437, %v438
        %v440 = vrot.slane %v439, 2
        %v441 = vadd.f32 %v439, %v440
        %v442 = vrot.slane %v441, 1
        %v443 = vadd.f32 %v441, %v442
        %v444 = vadd.f32 %v276, %v292
        %v445 = vrot.slane %v444, 4
        %v446 = vadd.f32 %v444, %v445
        %v447 = vrot.slane %v446, 2
        %v448 = vadd.f32 %v446, %v447
        %v449 = vrot.slane %v448, 1
        %v450 = vadd.f32 %v448, %v449
        %v451 = vadd.f32 %v277, %v293
        %v452 = vrot.slane %v451, 4
        %v453 = vadd.f32 %v451, %v452
        %v454 = vrot.slane %v453, 2
        %v455 = vadd.f32 %v453, %v454
        %v456 = vrot.slane %v455, 1
        %v457 = vadd.f32 %v455, %v456
        %v458 = vadd.f32 %v278, %v294
        %v459 = vrot.slane %v458, 4
        %v460 = vadd.f32 %v458, %v459
        %v461 = vrot.slane %v460, 2
        %v462 = vadd.f32 %v460, %v461
        %v463 = vrot.slane %v462, 1
        %v464 = vadd.f32 %v462, %v463
        %v465 = vadd.f32 %v279, %v295
        %v466 = vrot.slane %v465, 4
        %v467 = vadd.f32 %v465, %v466
        %v468 = vrot.slane %v467, 2
        %v469 = vadd.f32 %v467, %v468
        %v470 = vrot.slane %v469, 1
        %v471 = vadd.f32 %v469, %v470
        %v472 = vadd.f32 %v280, %v296
        %v473 = vrot.slane %v472, 4
        %v474 = vadd.f32 %v472, %v473
        %v475 = vrot.slane %v474, 2
        %v476 = vadd.f32 %v474, %v475
        %v477 = vrot.slane %v476, 1
        %v478 = vadd.f32 %v476, %v477
        %v479 = vadd.f32 %v281, %v297
        %v480 = vrot.slane %v479, 4
        %v481 = vadd.f32 %v479, %v480
        %v482 = vrot.slane %v481, 2
        %v483 = vadd.f32 %v481, %v482
        %v484 = vrot.slane %v483, 1
        %v485 = vadd.f32 %v483, %v484
        %v486 = vadd.f32 %v282, %v298
        %v487 = vrot.slane %v486, 4
        %v488 = vadd.f32 %v486, %v487
        %v489 = vrot.slane %v488, 2
        %v490 = vadd.f32 %v488, %v489
        %v491 = vrot.slane %v490, 1
        %v492 = vadd.f32 %v490, %v491
        %v493 = vadd.f32 %v283, %v299
        %v494 = vrot.slane %v493, 4
        %v495 = vadd.f32 %v493, %v494
        %v496 = vrot.slane %v495, 2
        %v497 = vadd.f32 %v495, %v496
        %v498 = vrot.slane %v497, 1
        %v499 = vadd.f32 %v497, %v498
        %v500 = vadd.f32 %v284, %v300
        %v501 = vrot.slane %v500, 4
        %v502 = vadd.f32 %v500, %v501
        %v503 = vrot.slane %v502, 2
        %v504 = vadd.f32 %v502, %v503
        %v505 = vrot.slane %v504, 1
        %v506 = vadd.f32 %v504, %v505
        %v507 = vadd.f32 %v285, %v301
        %v508 = vrot.slane %v507, 4
        %v509 = vadd.f32 %v507, %v508
        %v510 = vrot.slane %v509, 2
        %v511 = vadd.f32 %v509, %v510
        %v512 = vrot.slane %v511, 1
        %v513 = vadd.f32 %v511, %v512
        %v514 = vadd.f32 %v286, %v302
        %v515 = vrot.slane %v514, 4
        %v516 = vadd.f32 %v514, %v515
        %v517 = vrot.slane %v516, 2
        %v518 = vadd.f32 %v516, %v517
        %v519 = vrot.slane %v518, 1
        %v520 = vadd.f32 %v518, %v519
        %v521 = vadd.f32 %v287, %v303
        %v522 = vrot.slane %v521, 4
        %v523 = vadd.f32 %v521, %v522
        %v524 = vrot.slane %v523, 2
        %v525 = vadd.f32 %v523, %v524
        %v526 = vrot.slane %v525, 1
        %v527 = vadd.f32 %v525, %v526
        %v560 = vcombine.low %v310, %v317
        %v561 = vcombine.low %v324, %v331
        %v563 = vunpack.c.l.s4 1983009808
        %v564 = vunpack.c.0.s8 %v563
        %v565 = vlaneseq
        %v566 = vshrl.u32 %v565, 7
        %v567 = vsub.s32 %v564, %v566
        %v568 = vrot.slane %v560, %v567
        %v570 = vunpack.c.l.s4 1983009808
        %v571 = vunpack.c.0.s8 %v570
        %v572 = vlaneseq
        %v573 = vshrl.u32 %v572, 7
        %v574 = vsub.s32 %v571, %v573
        %v575 = vrot.slane %v561, %v574
        %v576 = vcombine.low %v568, %v575
        %v577 = vcombine.low %v338, %v345
        %v578 = vcombine.low %v352, %v359
        %v580 = vunpack.c.l.s4 1983009808
        %v581 = vunpack.c.0.s8 %v580
        %v582 = vlaneseq
        %v583 = vshrl.u32 %v582, 7
        %v584 = vsub.s32 %v581, %v583
        %v585 = vrot.slane %v577, %v584
        %v587 = vunpack.c.l.s4 1983009808
        %v588 = vunpack.c.0.s8 %v587
        %v589 = vlaneseq
        %v590 = vshrl.u32 %v589, 7
        %v591 = vsub.s32 %v588, %v590
        %v592 = vrot.slane %v578, %v591
        %v593 = vcombine.low %v585, %v592
        %v594 = vcombine.low %v366, %v373
        %v595 = vcombine.low %v380, %v387
        %v597 = vunpack.c.l.s4 1983009808
        %v598 = vunpack.c.0.s8 %v597
        %v599 = vlaneseq
        %v600 = vshrl.u32 %v599, 7
        %v601 = vsub.s32 %v598, %v600
        %v602 = vrot.slane %v594, %v601
        %v604 = vunpack.c.l.s4 1983009808
        %v605 = vunpack.c.0.s8 %v604
        %v606 = vlaneseq
        %v607 = vshrl.u32 %v606, 7
        %v608 = vsub.s32 %v605, %v607
        %v609 = vrot.slane %v595, %v608
        %v610 = vcombine.low %v602, %v609
        %v611 = vcombine.low %v394, %v401
        %v612 = vcombine.low %v408, %v415
        %v614 = vunpack.c.l.s4 1983009808
        %v615 = vunpack.c.0.s8 %v614
        %v616 = vlaneseq
        %v617 = vshrl.u32 %v616, 7
        %v618 = vsub.s32 %v615, %v617
        %v619 = vrot.slane %v611, %v618
        %v621 = vunpack.c.l.s4 1983009808
        %v622 = vunpack.c.0.s8 %v621
        %v623 = vlaneseq
        %v624 = vshrl.u32 %v623, 7
        %v625 = vsub.s32 %v622, %v624
        %v626 = vrot.slane %v612, %v625
        %v627 = vcombine.low %v619, %v626
        %v628 = vcombine.low %v422, %v429
        %v629 = vcombine.low %v436, %v443
        %v631 = vunpack.c.l.s4 1983009808
        %v632 = vunpack.c.0.s8 %v631
        %v633 = vlaneseq
        %v634 = vshrl.u32 %v633, 7
        %v635 = vsub.s32 %v632, %v634
        %v636 = vrot.slane %v628, %v635
        %v638 = vunpack.c.l.s4 1983009808
        %v639 = vunpack.c.0.s8 %v638
        %v640 = vlaneseq
        %v641 = vshrl.u32 %v640, 7
        %v642 = vsub.s32 %v639, %v641
        %v643 = vrot.slane %v629, %v642
        %v644 = vcombine.low %v636, %v643
        %v645 = vcombine.low %v450, %v457
        %v646 = vcombine.low %v464, %v471
        %v648 = vunpack.c.l.s4 1983009808
        %v649 = vunpack.c.0.s8 %v648
        %v650 = vlaneseq
        %v651 = vshrl.u32 %v650, 7
        %v652 = vsub.s32 %v649, %v651
        %v653 = vrot.slane %v645, %v652
        %v655 = vunpack.c.l.s4 1983009808
        %v656 = vunpack.c.0.s8 %v655
        %v657 = vlaneseq
        %v658 = vshrl.u32 %v657, 7
        %v659 = vsub.s32 %v656, %v658
        %v660 = vrot.slane %v646, %v659
        %v661 = vcombine.low %v653, %v660
        %v662 = vcombine.low %v478, %v485
        %v663 = vcombine.low %v492, %v499
        %v665 = vunpack.c.l.s4 1983009808
        %v666 = vunpack.c.0.s8 %v665
        %v667 = vlaneseq
        %v668 = vshrl.u32 %v667, 7
        %v669 = vsub.s32 %v666, %v668
        %v670 = vrot.slane %v662, %v669
        %v672 = vunpack.c.l.s4 1983009808
        %v673 = vunpack.c.0.s8 %v672
        %v674 = vlaneseq
        %v675 = vshrl.u32 %v674, 7
        %v676 = vsub.s32 %v673, %v675
        %v677 = vrot.slane %v663, %v676
        %v678 = vcombine.low %v670, %v677
        %v679 = vcombine.low %v506, %v513
        %v680 = vcombine.low %v520, %v527
        %v682 = vunpack.c.l.s4 1983009808
        %v683 = vunpack.c.0.s8 %v682
        %v684 = vlaneseq
        %v685 = vshrl.u32 %v684, 7
        %v686 = vsub.s32 %v683, %v685
        %v687 = vrot.slane %v679, %v686
        %v689 = vunpack.c.l.s4 1983009808
        %v690 = vunpack.c.0.s8 %v689
        %v691 = vlaneseq
        %v692 = vshrl.u32 %v691, 7
        %v693 = vsub.s32 %v690, %v692
        %v694 = vrot.slane %v680, %v693
        %v695 = vcombine.low %v687, %v694
        %vm696 = vcmask 1044484
        %v697 = vsel %vm696, %v576, %v576
        %vm698 = vcmask 1046534
        %v699 = vsel %vm698, %v576, %v697
        %v700 = vrot.slane %v644, 7
        %vm701 = vcmask 1041409
        %v702 = vsel %vm701, %v700, %v699
        %vm703 = vcmask 1043459
        %v704 = vsel %vm703, %v700, %v702
        %vm705 = vcmask 1045509
        %v706 = vsel %vm705, %v700, %v704
        %vm707 = vcmask 1047559
        %v708 = vsel %vm707, %v700, %v706
        %v709 = vsel %vm696, %v593, %v593
        %v710 = vsel %vm698, %v593, %v709
        %v711 = vrot.slane %v661, 7
        %v712 = vsel %vm701, %v711, %v710
        %v713 = vsel %vm703, %v711, %v712
        %v714 = vsel %vm705, %v711, %v713
        %v715 = vsel %vm707, %v711, %v714
        %v716 = vsel %vm696, %v610, %v610
        %v717 = vsel %vm698, %v610, %v716
        %v718 = vrot.slane %v678, 7
        %v719 = vsel %vm701, %v718, %v717
        %v720 = vsel %vm703, %v718, %v719
        %v721 = vsel %vm705, %v718, %v720
        %v722 = vsel %vm707, %v718, %v721
        %v723 = vsel %vm696, %v627, %v627
        %v724 = vsel %vm698, %v627, %v723
        %v725 = vrot.slane %v695, 7
        %v726 = vsel %vm701, %v725, %v724
        %v727 = vsel %vm703, %v725, %v726
        %v728 = vsel %vm705, %v725, %v727
        %v729 = vsel %vm707, %v725, %v728
        %734 = vst [vmem:[%s161] sm:$0xff] %v708
        %735 = vst [vmem:[%s161 + $0x8] sm:$0xff] %v715
        %736 = vst [vmem:[%s161 + $0x10] sm:$0xff] %v722
        %737 = vst [vmem:[%s161 + $0x18] sm:$0xff] %v729
        %s738 = sand.u32 %s74, 1
        %s739 = scalar_lea.sflag [#allocation4], %s738
        %s740 = sand.u32 %s74, 1
        %s741 = smul.addr %s740, 32
        %s742 = scalar_lea.vmem [#allocation5], %s741
        // Predicated region
        $region33: #{tpu_custom_call.1} parent=27 // pred_check
          %p743 = pneg %p84
        $region34: #{tpu_custom_call.1} parent=27 // pred_check_branch
          %745 = sbr.rel (%p743) target = $region36
        $region35: #{tpu_custom_call.1} parent=27 // pred_region
          %s746 = smul.u32 16, %s19
          %s748 = ssub.s32 512, 512
          %749 = vsyncadd %s739, %s748
          %s750 = smul.addr %s746, 32
          %s751 = scalar_lea.hbm %s2, %s750
          %s753 = sshll.u32 %s742, 4
          %s754 = int_to_ptr.vmem [resolvable:$true] %s753
          %756 = dma.vmem_to_hbm [thread:$0]  %s754, 512, %s751, %s739
        $region36: #{tpu_custom_call.1} parent=27 // pred_fallthru
          _
      $region28: #{tpu_custom_call.1} parent=5 // pred_fallthru
        _
      %p757 = scmp.le.s32.totalorder 2, %s14
      // Predicated region
      $region37: #{tpu_custom_call.1} parent=5 // pred_check
        %p758 = pneg %p757
      $region38: #{tpu_custom_call.1} parent=5 // pred_check_branch
        %760 = sbr.rel (%p758) target = $region40
      $region39: #{tpu_custom_call.1} parent=5 // pred_region
        %s761 = ssub.s32 %s14, 2
        // Predicated region
        $region41: #{tpu_custom_call.1} parent=39 // pred_check
          %p762 = pneg %p90
        $region42: #{tpu_custom_call.1} parent=39 // pred_check_branch
          %764 = sbr.rel (%p762) target = $region44
        $region43: #{tpu_custom_call.1} parent=39 // pred_region
          %s765 = sand.u32 %s75, 1
          %s766 = scalar_lea.sflag [#allocation4], %s765
          %s767 = sand.u32 %s75, 1
          %s768 = smul.addr %s767, 32
          %s769 = scalar_lea.vmem [#allocation5], %s768
          %770 = dma.done %s766, 512
        $region44: #{tpu_custom_call.1} parent=39 // pred_fallthru
          _
      $region40: #{tpu_custom_call.1} parent=5 // pred_fallthru
        _
    $region6: #{tpu_custom_call.1} parent=1 // loop_footer
      %s18 = sadd.s32 1, %s14
    $region7: #{tpu_custom_call.1} parent=1 // loop_footer_branch
      %13 = sbr.rel target = $region3
    $region8: #{tpu_custom_call.1} parent=1 // loop_exit
      _
    %771 = vsyncpa [#allocation3], 1
    %s772 = scalar_lea.sflag [#allocation3], 1
    %773 = vsyncpa %s772, 1
    %774 = vsyncpa [#allocation4], 1
    %s775 = scalar_lea.sflag [#allocation4], 1
    %776 = vsyncpa %s775, 1

// kernel: tpu_custom_call.1
$region0: #{tpu_custom_call.1}
  #allocation0 [shape = 'u32[]', space=smem, size = 0x4, offset = 0x4, fixed_abs, tag = 'smem constant byte address 0x4 - core index']
  #allocation1 [shape = 'u32[144,128]{1,0:T(1,128)}', space=vmem, size = 0x12000, scoped, tag = 'internal scratch']
  %s0 = inlined_call_operand.hbm [shape: f32[2,16,8192], index: 0, kind: input, shape index: {}]
  %s1 = inlined_call_operand.vmem [shape: f32[16,1], index: 1, kind: input, shape index: {}]
  %s2 = inlined_call_operand.hbm [shape: f32[2,8192], index: 2, kind: output, shape index: {}]
  %s3 = sld [smem:[#allocation0]]
  $region45: #{tpu_custom_call.1} parent=0
    _
  %s5 = ssub.s32 1, %s3
  %s6 = scalar_select 0, %s5, %s3
  $region1: #{tpu_custom_call.1} parent=0
    #allocation2 [shape = 'u8[524288]{0}', space=vmem, size = 0x80000, scoped, tag = 'input window, operand 0']
    #allocation3 [shape = 's32[2]{0}', space=sflag, size = 0x8, scoped, tag = 'scoped memory for tpu_custom_call.1']
    #allocation4 [shape = 's32[2]{0}', space=sflag, size = 0x8, scoped, tag = 'scoped memory for tpu_custom_call.1']
    #allocation5 [shape = 'u8[32768]{0}', space=vmem, size = 0x8000, scoped, tag = 'output window, operand 0']
    %7 = vsyncpa [#allocation3], 0
    %s8 = scalar_lea.sflag [#allocation3], 1
    %9 = vsyncpa %s8, 0
    %10 = vsyncpa [#allocation4], 0
    %s11 = scalar_lea.sflag [#allocation4], 1
    %12 = vsyncpa %s11, 0
    loop: start=0, step=1, limit=6
    $region2: #{tpu_custom_call.1} parent=1 // loop_pre_header
      _
    $region3: #{tpu_custom_call.1} parent=1 // loop_header
      %s14 = sphi 0, %s18
      %p15 = scmp.ge.s32.totalorder %s14, 6
      %s24 = sphi 0, %s26
      %s27 = sphi 0, %s24
      %s28 = sphi 0, %s27
      %s44 = sphi 0, %s28
      %s48 = sphi 0, %s48
      %s50 = sphi 0, %s48
      %s51 = sphi 0, %s50
      %s65 = sphi 0, %s51
      %s71 = sphi 0, %s73
      %s74 = sphi 0, %s71
      %s75 = sphi 0, %s74
      %s91 = sphi 0, %s75
    $region4: #{tpu_custom_call.1} parent=1 // loop_header_branch
      %17 = sbr.rel (%p15) target = $region8
    $region5: #{tpu_custom_call.1} parent=1 // loop_body
      %s19 = ssub.s32 %s14, 1
      %s20 = ssub.s32 %s14, 2
      %s21 = sadd.s32 %s14, 1
      %s22 = ssub.s32 %s14, %s21
      %p23 = scmp.eq.s32.totalorder %s22, 0
      %s25 = sadd.s32 %s24, 1
      %s26 = scalar_select %p23, %s24, %s25
      %p29 = pneg %p23
      %p30 = scmp.eq.s32.totalorder %s14, 3
      %p31 = por %p29, %p30
      %p32 = scmp.ne.s32.totalorder %s24, %s27
      %p33 = scmp.eq.s32.totalorder %s14, 0
      %p34 = por %p32, %p33
      %p35 = scmp.ne.s32.totalorder %s24, %s27
      %p36 = scmp.eq.s32.totalorder %s19, 3
      %p37 = por %p35, %p36
      %p38 = scmp.ne.s32.totalorder %s27, %s28
      %p39 = scmp.eq.s32.totalorder %s19, 0
      %p40 = por %p38, %p39
      %p41 = scmp.ne.s32.totalorder %s27, %s28
      %p42 = scmp.eq.s32.totalorder %s20, 3
      %p43 = por %p41, %p42
      %p45 = scmp.ne.s32.totalorder %s28, %s44
      %p46 = scmp.eq.s32.totalorder %s20, 0
      %p47 = por %p45, %p46
      %s49 = sadd.s32 %s48, 1
      %p52 = scmp.eq.s32.totalorder %s14, 3
      %p53 = scmp.ne.s32.totalorder %s48, %s50
      %p54 = scmp.eq.s32.totalorder %s14, 0
      %p55 = por %p53, %p54
      %p56 = scmp.ne.s32.totalorder %s48, %s50
      %p57 = scmp.eq.s32.totalorder %s19, 3
      %p58 = por %p56, %p57
      %p59 = scmp.ne.s32.totalorder %s50, %s51
      %p60 = scmp.eq.s32.totalorder %s19, 0
      %p61 = por %p59, %p60
      %p62 = scmp.ne.s32.totalorder %s50, %s51
      %p63 = scmp.eq.s32.totalorder %s20, 3
      %p64 = por %p62, %p63
      %p66 = scmp.ne.s32.totalorder %s51, %s65
      %p67 = scmp.eq.s32.totalorder %s20, 0
      %p68 = por %p66, %p67
      %s69 = ssub.s32 %s14, %s21
      %p70 = scmp.eq.s32.totalorder %s69, 0
      %s72 = sadd.s32 %s71, 1
      %s73 = scalar_select %p70, %s71, %s72
      %p76 = pneg %p70
      %p77 = scmp.eq.s32.totalorder %s14, 3
      %p78 = por %p76, %p77
      %p79 = scmp.ne.s32.totalorder %s71, %s74
      %p80 = scmp.eq.s32.totalorder %s14, 0
      %p81 = por %p79, %p80
      %p82 = scmp.ne.s32.totalorder %s71, %s74
      %p83 = scmp.eq.s32.totalorder %s19, 3
      %p84 = por %p82, %p83
      %p85 = scmp.ne.s32.totalorder %s74, %s75
      %p86 = scmp.eq.s32.totalorder %s19, 0
      %p87 = por %p85, %p86
      %p88 = scmp.ne.s32.totalorder %s74, %s75
      %p89 = scmp.eq.s32.totalorder %s20, 3
      %p90 = por %p88, %p89
      %p92 = scmp.ne.s32.totalorder %s75, %s91
      %p93 = scmp.eq.s32.totalorder %s20, 0
      %p94 = por %p92, %p93
      %p95 = scmp.le.s32.totalorder 1, %s14
      %p96 = scmp.lt.s32.totalorder %s14, 5
      %p97 = pnand %p95, %p96
      %p98 = pneg %p97
      // Predicated region
      $region9: #{tpu_custom_call.1} parent=5 // pred_check
        _
      $region10: #{tpu_custom_call.1} parent=5 // pred_check_branch
        %100 = sbr.rel (%p97) target = $region12
      $region11: #{tpu_custom_call.1} parent=5 // pred_region
        %s101 = ssub.s32 %s14, 1
        // Predicated region
        $region13: #{tpu_custom_call.1} parent=11 // pred_check
          %p102 = pneg %p61
        $region14: #{tpu_custom_call.1} parent=11 // pred_check_branch
          %104 = sbr.rel (%p102) target = $region16
        $region15: #{tpu_custom_call.1} parent=11 // pred_region
          _
        $region16: #{tpu_custom_call.1} parent=11 // pred_fallthru
          _
      $region12: #{tpu_custom_call.1} parent=5 // pred_fallthru
        _
      %p105 = scmp.lt.s32.totalorder %s14, 4
      // Predicated region
      $region17: #{tpu_custom_call.1} parent=5 // pred_check
        %p106 = pneg %p105
      $region18: #{tpu_custom_call.1} parent=5 // pred_check_branch
        %108 = sbr.rel (%p106) target = $region20
      $region19: #{tpu_custom_call.1} parent=5 // pred_region
        // Predicated region
        $region21: #{tpu_custom_call.1} parent=19 // pred_check
          %p109 = pneg %p34
        $region22: #{tpu_custom_call.1} parent=19 // pred_check_branch
          %111 = sbr.rel (%p109) target = $region24
        $region23: #{tpu_custom_call.1} parent=19 // pred_region
          %s112 = sand.u32 %s24, 1
          %s113 = scalar_lea.sflag [#allocation3], %s112
          %s114 = sand.u32 %s24, 1
          %s115 = smul.addr %s114, 512
          %s116 = scalar_lea.vmem [#allocation2], %s115
          %s117 = smul.u32 16, %s14
          %s119 = ssub.s32 8192, 8192
          %120 = vsyncadd %s113, %s119
          %s121 = smul.addr %s117, 128
          %s122 = scalar_lea.hbm %s0, %s121
          %s123 = sshll.u32 %s116, 4
          %s124 = int_to_ptr.vmem [resolvable:$true] %s123
          %129 = dma.hbm_to_vmem [thread:$0]  %s122, 8192, %s124, %s113, 8192, 2048, 128
        $region24: #{tpu_custom_call.1} parent=19 // pred_fallthru
          _
      $region20: #{tpu_custom_call.1} parent=5 // pred_fallthru
        _
      %p130 = scmp.le.s32.totalorder 1, %s14
      %p131 = scmp.lt.s32.totalorder %s14, 5
      %p132 = pnand %p130, %p131
      %p133 = pneg %p132
      // Predicated region
      $region25: #{tpu_custom_call.1} parent=5 // pred_check
        _
      $region26: #{tpu_custom_call.1} parent=5 // pred_check_branch
        %135 = sbr.rel (%p132) target = $region28
      $region27: #{tpu_custom_call.1} parent=5 // pred_region
        %s136 = ssub.s32 %s14, 1
        %s137 = sand.u32 %s27, 1
        %s138 = scalar_lea.sflag [#allocation3], %s137
        %s139 = sand.u32 %s27, 1
        %s140 = smul.addr %s139, 512
        %s141 = scalar_lea.vmem [#allocation2], %s140
        // Predicated region
        $region29: #{tpu_custom_call.1} parent=27 // pred_check
          %p142 = pneg %p40
        $region30: #{tpu_custom_call.1} parent=27 // pred_check_branch
          %144 = sbr.rel (%p142) target = $region32
        $region31: #{tpu_custom_call.1} parent=27 // pred_region
          %145 = dma.done %s138, 8192
        $region32: #{tpu_custom_call.1} parent=27 // pred_fallthru
          _
        %s146 = sand.u32 %s27, 1
        %s147 = scalar_lea.sflag [#allocation3], %s146
        %s148 = sand.u32 %s27, 1
        %s149 = smul.addr %s148, 512
        %s150 = scalar_lea.vmem [#allocation2], %s149
        %p151 = pneg %p40
        %p152 = pneg %p37
        %p153 = pneg %p61
        %p154 = pneg %p58
        %p155 = pneg %p87
        %p156 = pneg %p84
        %s157 = sand.u32 %s74, 1
        %s158 = scalar_lea.sflag [#allocation4], %s157
        %s159 = sand.u32 %s74, 1
        %s160 = smul.addr %s159, 32
        %s161 = scalar_lea.vmem [#allocation5], %s160
        %s162 = smul.u32 16, %s19
        %s163 = smul.u32 16, %s19
        %v164 = vld [vmem:[%s141] sm:$0xff]
        %v165 = vld [vmem:[%s141 + $0x8] sm:$0xff]
        %v166 = vld [vmem:[%s141 + $0x10] sm:$0xff]
        %v167 = vld [vmem:[%s141 + $0x18] sm:$0xff]
        %v168 = vld [vmem:[%s141 + $0x20] sm:$0xff]
        %v169 = vld [vmem:[%s141 + $0x28] sm:$0xff]
        %v170 = vld [vmem:[%s141 + $0x30] sm:$0xff]
        %v171 = vld [vmem:[%s141 + $0x38] sm:$0xff]
        %v172 = vld [vmem:[%s141 + $0x40] sm:$0xff]
        %v173 = vld [vmem:[%s141 + $0x48] sm:$0xff]
        %v174 = vld [vmem:[%s141 + $0x50] sm:$0xff]
        %v175 = vld [vmem:[%s141 + $0x58] sm:$0xff]
        %v176 = vld [vmem:[%s141 + $0x60] sm:$0xff]
        %v177 = vld [vmem:[%s141 + $0x68] sm:$0xff]
        %v178 = vld [vmem:[%s141 + $0x70] sm:$0xff]
        %v179 = vld [vmem:[%s141 + $0x78] sm:$0xff]
        %v180 = vld [vmem:[%s141 + $0x80] sm:$0xff]
        %v181 = vld [vmem:[%s141 + $0x88] sm:$0xff]
        %v182 = vld [vmem:[%s141 + $0x90] sm:$0xff]
        %v183 = vld [vmem:[%s141 + $0x98] sm:$0xff]
        %v184 = vld [vmem:[%s141 + $0xa0] sm:$0xff]
        %v185 = vld [vmem:[%s141 + $0xa8] sm:$0xff]
        %v186 = vld [vmem:[%s141 + $0xb0] sm:$0xff]
        %v187 = vld [vmem:[%s141 + $0xb8] sm:$0xff]
        %v188 = vld [vmem:[%s141 + $0xc0] sm:$0xff]
        %v189 = vld [vmem:[%s141 + $0xc8] sm:$0xff]
        %v190 = vld [vmem:[%s141 + $0xd0] sm:$0xff]
        %v191 = vld [vmem:[%s141 + $0xd8] sm:$0xff]
        %v192 = vld [vmem:[%s141 + $0xe0] sm:$0xff]
        %v193 = vld [vmem:[%s141 + $0xe8] sm:$0xff]
        %v194 = vld [vmem:[%s141 + $0xf0] sm:$0xff]
        %v195 = vld [vmem:[%s141 + $0xf8] sm:$0xff]
        %v196 = vld [vmem:[%s141 + $0x100] sm:$0xff]
        %v197 = vld [vmem:[%s141 + $0x108] sm:$0xff]
        %v198 = vld [vmem:[%s141 + $0x110] sm:$0xff]
        %v199 = vld [vmem:[%s141 + $0x118] sm:$0xff]
        %v200 = vld [vmem:[%s141 + $0x120] sm:$0xff]
        %v201 = vld [vmem:[%s141 + $0x128] sm:$0xff]
        %v202 = vld [vmem:[%s141 + $0x130] sm:$0xff]
        %v203 = vld [vmem:[%s141 + $0x138] sm:$0xff]
        %v204 = vld [vmem:[%s141 + $0x140] sm:$0xff]
        %v205 = vld [vmem:[%s141 + $0x148] sm:$0xff]
        %v206 = vld [vmem:[%s141 + $0x150] sm:$0xff]
        %v207 = vld [vmem:[%s141 + $0x158] sm:$0xff]
        %v208 = vld [vmem:[%s141 + $0x160] sm:$0xff]
        %v209 = vld [vmem:[%s141 + $0x168] sm:$0xff]
        %v210 = vld [vmem:[%s141 + $0x170] sm:$0xff]
        %v211 = vld [vmem:[%s141 + $0x178] sm:$0xff]
        %v212 = vld [vmem:[%s141 + $0x180] sm:$0xff]
        %v213 = vld [vmem:[%s141 + $0x188] sm:$0xff]
        %v214 = vld [vmem:[%s141 + $0x190] sm:$0xff]
        %v215 = vld [vmem:[%s141 + $0x198] sm:$0xff]
        %v216 = vld [vmem:[%s141 + $0x1a0] sm:$0xff]
        %v217 = vld [vmem:[%s141 + $0x1a8] sm:$0xff]
        %v218 = vld [vmem:[%s141 + $0x1b0] sm:$0xff]
        %v219 = vld [vmem:[%s141 + $0x1b8] sm:$0xff]
        %v220 = vld [vmem:[%s141 + $0x1c0] sm:$0xff]
        %v221 = vld [vmem:[%s141 + $0x1c8] sm:$0xff]
        %v222 = vld [vmem:[%s141 + $0x1d0] sm:$0xff]
        %v223 = vld [vmem:[%s141 + $0x1d8] sm:$0xff]
        %v224 = vld [vmem:[%s141 + $0x1e0] sm:$0xff]
        %v225 = vld [vmem:[%s141 + $0x1e8] sm:$0xff]
        %v226 = vld [vmem:[%s141 + $0x1f0] sm:$0xff]
        %v227 = vld [vmem:[%s141 + $0x1f8] sm:$0xff]
        %v228 = vld [vmem:[%s1] sm:$0xff]
        %v229 = vld [vmem:[%s1 + $0x8] sm:$0xff]
        %231 = vset.pattern.permute.xlu0 0
        %232 = vperm.xlu0 %231, %v228
        %v233 = vpop.permute.xlu0 %232
        %236 = vset.pattern.permute.xlu0 0
        %237 = vperm.xlu0 %236, %v229
        %v238 = vpop.permute.xlu0 %237
        %v240 = vmul.f32 %v164, %v233
        %v241 = vmul.f32 %v165, %v233
        %v242 = vmul.f32 %v166, %v233
        %v243 = vmul.f32 %v167, %v233
        %v244 = vmul.f32 %v168, %v233
        %v245 = vmul.f32 %v169, %v233
        %v246 = vmul.f32 %v170, %v233
        %v247 = vmul.f32 %v171, %v233
        %v248 = vmul.f32 %v172, %v233
        %v249 = vmul.f32 %v173, %v233
        %v250 = vmul.f32 %v174, %v233
        %v251 = vmul.f32 %v175, %v233
        %v252 = vmul.f32 %v176, %v233
        %v253 = vmul.f32 %v177, %v233
        %v254 = vmul.f32 %v178, %v233
        %v255 = vmul.f32 %v179, %v233
        %v256 = vmul.f32 %v180, %v238
        %v257 = vmul.f32 %v181, %v238
        %v258 = vmul.f32 %v182, %v238
        %v259 = vmul.f32 %v183, %v238
        %v260 = vmul.f32 %v184, %v238
        %v261 = vmul.f32 %v185, %v238
        %v262 = vmul.f32 %v186, %v238
        %v263 = vmul.f32 %v187, %v238
        %v264 = vmul.f32 %v188, %v238
        %v265 = vmul.f32 %v189, %v238
        %v266 = vmul.f32 %v190, %v238
        %v267 = vmul.f32 %v191, %v238
        %v268 = vmul.f32 %v192, %v238
        %v269 = vmul.f32 %v193, %v238
        %v270 = vmul.f32 %v194, %v238
        %v271 = vmul.f32 %v195, %v238
        %v272 = vmul.f32 %v196, %v233
        %v273 = vmul.f32 %v197, %v233
        %v274 = vmul.f32 %v198, %v233
        %v275 = vmul.f32 %v199, %v233
        %v276 = vmul.f32 %v200, %v233
        %v277 = vmul.f32 %v201, %v233
        %v278 = vmul.f32 %v202, %v233
        %v279 = vmul.f32 %v203, %v233
        %v280 = vmul.f32 %v204, %v233
        %v281 = vmul.f32 %v205, %v233
        %v282 = vmul.f32 %v206, %v233
        %v283 = vmul.f32 %v207, %v233
        %v284 = vmul.f32 %v208, %v233
        %v285 = vmul.f32 %v209, %v233
        %v286 = vmul.f32 %v210, %v233
        %v287 = vmul.f32 %v211, %v233
        %v288 = vmul.f32 %v212, %v238
        %v289 = vmul.f32 %v213, %v238
        %v290 = vmul.f32 %v214, %v238
        %v291 = vmul.f32 %v215, %v238
        %v292 = vmul.f32 %v216, %v238
        %v293 = vmul.f32 %v217, %v238
        %v294 = vmul.f32 %v218, %v238
        %v295 = vmul.f32 %v219, %v238
        %v296 = vmul.f32 %v220, %v238
        %v297 = vmul.f32 %v221, %v238
        %v298 = vmul.f32 %v222, %v238
        %v299 = vmul.f32 %v223, %v238
        %v300 = vmul.f32 %v224, %v238
        %v301 = vmul.f32 %v225, %v238
        %v302 = vmul.f32 %v226, %v238
        %v303 = vmul.f32 %v227, %v238
        %v304 = vadd.f32 %v240, %v256
        %v305 = vrot.slane %v304, 4
        %v306 = vadd.f32 %v304, %v305
        %v307 = vrot.slane %v306, 2
        %v308 = vadd.f32 %v306, %v307
        %v309 = vrot.slane %v308, 1
        %v310 = vadd.f32 %v308, %v309
        %v311 = vadd.f32 %v241, %v257
        %v312 = vrot.slane %v311, 4
        %v313 = vadd.f32 %v311, %v312
        %v314 = vrot.slane %v313, 2
        %v315 = vadd.f32 %v313, %v314
        %v316 = vrot.slane %v315, 1
        %v317 = vadd.f32 %v315, %v316
        %v318 = vadd.f32 %v242, %v258
        %v319 = vrot.slane %v318, 4
        %v320 = vadd.f32 %v318, %v319
        %v321 = vrot.slane %v320, 2
        %v322 = vadd.f32 %v320, %v321
        %v323 = vrot.slane %v322, 1
        %v324 = vadd.f32 %v322, %v323
        %v325 = vadd.f32 %v243, %v259
        %v326 = vrot.slane %v325, 4
        %v327 = vadd.f32 %v325, %v326
        %v328 = vrot.slane %v327, 2
        %v329 = vadd.f32 %v327, %v328
        %v330 = vrot.slane %v329, 1
        %v331 = vadd.f32 %v329, %v330
        %v332 = vadd.f32 %v244, %v260
        %v333 = vrot.slane %v332, 4
        %v334 = vadd.f32 %v332, %v333
        %v335 = vrot.slane %v334, 2
        %v336 = vadd.f32 %v334, %v335
        %v337 = vrot.slane %v336, 1
        %v338 = vadd.f32 %v336, %v337
        %v339 = vadd.f32 %v245, %v261
        %v340 = vrot.slane %v339, 4
        %v341 = vadd.f32 %v339, %v340
        %v342 = vrot.slane %v341, 2
        %v343 = vadd.f32 %v341, %v342
        %v344 = vrot.slane %v343, 1
        %v345 = vadd.f32 %v343, %v344
        %v346 = vadd.f32 %v246, %v262
        %v347 = vrot.slane %v346, 4
        %v348 = vadd.f32 %v346, %v347
        %v349 = vrot.slane %v348, 2
        %v350 = vadd.f32 %v348, %v349
        %v351 = vrot.slane %v350, 1
        %v352 = vadd.f32 %v350, %v351
        %v353 = vadd.f32 %v247, %v263
        %v354 = vrot.slane %v353, 4
        %v355 = vadd.f32 %v353, %v354
        %v356 = vrot.slane %v355, 2
        %v357 = vadd.f32 %v355, %v356
        %v358 = vrot.slane %v357, 1
        %v359 = vadd.f32 %v357, %v358
        %v360 = vadd.f32 %v248, %v264
        %v361 = vrot.slane %v360, 4
        %v362 = vadd.f32 %v360, %v361
        %v363 = vrot.slane %v362, 2
        %v364 = vadd.f32 %v362, %v363
        %v365 = vrot.slane %v364, 1
        %v366 = vadd.f32 %v364, %v365
        %v367 = vadd.f32 %v249, %v265
        %v368 = vrot.slane %v367, 4
        %v369 = vadd.f32 %v367, %v368
        %v370 = vrot.slane %v369, 2
        %v371 = vadd.f32 %v369, %v370
        %v372 = vrot.slane %v371, 1
        %v373 = vadd.f32 %v371, %v372
        %v374 = vadd.f32 %v250, %v266
        %v375 = vrot.slane %v374, 4
        %v376 = vadd.f32 %v374, %v375
        %v377 = vrot.slane %v376, 2
        %v378 = vadd.f32 %v376, %v377
        %v379 = vrot.slane %v378, 1
        %v380 = vadd.f32 %v378, %v379
        %v381 = vadd.f32 %v251, %v267
        %v382 = vrot.slane %v381, 4
        %v383 = vadd.f32 %v381, %v382
        %v384 = vrot.slane %v383, 2
        %v385 = vadd.f32 %v383, %v384
        %v386 = vrot.slane %v385, 1
        %v387 = vadd.f32 %v385, %v386
        %v388 = vadd.f32 %v252, %v268
        %v389 = vrot.slane %v388, 4
        %v390 = vadd.f32 %v388, %v389
        %v391 = vrot.slane %v390, 2
        %v392 = vadd.f32 %v390, %v391
        %v393 = vrot.slane %v392, 1
        %v394 = vadd.f32 %v392, %v393
        %v395 = vadd.f32 %v253, %v269
        %v396 = vrot.slane %v395, 4
        %v397 = vadd.f32 %v395, %v396
        %v398 = vrot.slane %v397, 2
        %v399 = vadd.f32 %v397, %v398
        %v400 = vrot.slane %v399, 1
        %v401 = vadd.f32 %v399, %v400
        %v402 = vadd.f32 %v254, %v270
        %v403 = vrot.slane %v402, 4
        %v404 = vadd.f32 %v402, %v403
        %v405 = vrot.slane %v404, 2
        %v406 = vadd.f32 %v404, %v405
        %v407 = vrot.slane %v406, 1
        %v408 = vadd.f32 %v406, %v407
        %v409 = vadd.f32 %v255, %v271
        %v410 = vrot.slane %v409, 4
        %v411 = vadd.f32 %v409, %v410
        %v412 = vrot.slane %v411, 2
        %v413 = vadd.f32 %v411, %v412
        %v414 = vrot.slane %v413, 1
        %v415 = vadd.f32 %v413, %v414
        %v416 = vadd.f32 %v272, %v288
        %v417 = vrot.slane %v416, 4
        %v418 = vadd.f32 %v416, %v417
        %v419 = vrot.slane %v418, 2
        %v420 = vadd.f32 %v418, %v419
        %v421 = vrot.slane %v420, 1
        %v422 = vadd.f32 %v420, %v421
        %v423 = vadd.f32 %v273, %v289
        %v424 = vrot.slane %v423, 4
        %v425 = vadd.f32 %v423, %v424
        %v426 = vrot.slane %v425, 2
        %v427 = vadd.f32 %v425, %v426
        %v428 = vrot.slane %v427, 1
        %v429 = vadd.f32 %v427, %v428
        %v430 = vadd.f32 %v274, %v290
        %v431 = vrot.slane %v430, 4
        %v432 = vadd.f32 %v430, %v431
        %v433 = vrot.slane %v432, 2
        %v434 = vadd.f32 %v432, %v433
        %v435 = vrot.slane %v434, 1
        %v436 = vadd.f32 %v434, %v435
        %v437 = vadd.f32 %v275, %v291
        %v438 = vrot.slane %v437, 4
        %v439 = vadd.f32 %v437, %v438
        %v440 = vrot.slane %v439, 2
        %v441 = vadd.f32 %v439, %v440
        %v442 = vrot.slane %v441, 1
        %v443 = vadd.f32 %v441, %v442
        %v444 = vadd.f32 %v276, %v292
        %v445 = vrot.slane %v444, 4
        %v446 = vadd.f32 %v444, %v445
        %v447 = vrot.slane %v446, 2
        %v448 = vadd.f32 %v446, %v447
        %v449 = vrot.slane %v448, 1
        %v450 = vadd.f32 %v448, %v449
        %v451 = vadd.f32 %v277, %v293
        %v452 = vrot.slane %v451, 4
        %v453 = vadd.f32 %v451, %v452
        %v454 = vrot.slane %v453, 2
        %v455 = vadd.f32 %v453, %v454
        %v456 = vrot.slane %v455, 1
        %v457 = vadd.f32 %v455, %v456
        %v458 = vadd.f32 %v278, %v294
        %v459 = vrot.slane %v458, 4
        %v460 = vadd.f32 %v458, %v459
        %v461 = vrot.slane %v460, 2
        %v462 = vadd.f32 %v460, %v461
        %v463 = vrot.slane %v462, 1
        %v464 = vadd.f32 %v462, %v463
        %v465 = vadd.f32 %v279, %v295
        %v466 = vrot.slane %v465, 4
        %v467 = vadd.f32 %v465, %v466
        %v468 = vrot.slane %v467, 2
        %v469 = vadd.f32 %v467, %v468
        %v470 = vrot.slane %v469, 1
        %v471 = vadd.f32 %v469, %v470
        %v472 = vadd.f32 %v280, %v296
        %v473 = vrot.slane %v472, 4
        %v474 = vadd.f32 %v472, %v473
        %v475 = vrot.slane %v474, 2
        %v476 = vadd.f32 %v474, %v475
        %v477 = vrot.slane %v476, 1
        %v478 = vadd.f32 %v476, %v477
        %v479 = vadd.f32 %v281, %v297
        %v480 = vrot.slane %v479, 4
        %v481 = vadd.f32 %v479, %v480
        %v482 = vrot.slane %v481, 2
        %v483 = vadd.f32 %v481, %v482
        %v484 = vrot.slane %v483, 1
        %v485 = vadd.f32 %v483, %v484
        %v486 = vadd.f32 %v282, %v298
        %v487 = vrot.slane %v486, 4
        %v488 = vadd.f32 %v486, %v487
        %v489 = vrot.slane %v488, 2
        %v490 = vadd.f32 %v488, %v489
        %v491 = vrot.slane %v490, 1
        %v492 = vadd.f32 %v490, %v491
        %v493 = vadd.f32 %v283, %v299
        %v494 = vrot.slane %v493, 4
        %v495 = vadd.f32 %v493, %v494
        %v496 = vrot.slane %v495, 2
        %v497 = vadd.f32 %v495, %v496
        %v498 = vrot.slane %v497, 1
        %v499 = vadd.f32 %v497, %v498
        %v500 = vadd.f32 %v284, %v300
        %v501 = vrot.slane %v500, 4
        %v502 = vadd.f32 %v500, %v501
        %v503 = vrot.slane %v502, 2
        %v504 = vadd.f32 %v502, %v503
        %v505 = vrot.slane %v504, 1
        %v506 = vadd.f32 %v504, %v505
        %v507 = vadd.f32 %v285, %v301
        %v508 = vrot.slane %v507, 4
        %v509 = vadd.f32 %v507, %v508
        %v510 = vrot.slane %v509, 2
        %v511 = vadd.f32 %v509, %v510
        %v512 = vrot.slane %v511, 1
        %v513 = vadd.f32 %v511, %v512
        %v514 = vadd.f32 %v286, %v302
        %v515 = vrot.slane %v514, 4
        %v516 = vadd.f32 %v514, %v515
        %v517 = vrot.slane %v516, 2
        %v518 = vadd.f32 %v516, %v517
        %v519 = vrot.slane %v518, 1
        %v520 = vadd.f32 %v518, %v519
        %v521 = vadd.f32 %v287, %v303
        %v522 = vrot.slane %v521, 4
        %v523 = vadd.f32 %v521, %v522
        %v524 = vrot.slane %v523, 2
        %v525 = vadd.f32 %v523, %v524
        %v526 = vrot.slane %v525, 1
        %v527 = vadd.f32 %v525, %v526
        %v560 = vcombine.low %v310, %v317
        %v561 = vcombine.low %v324, %v331
        %v563 = vunpack.c.l.s4 1983009808
        %v564 = vunpack.c.0.s8 %v563
        %v565 = vlaneseq
        %v566 = vshrl.u32 %v565, 7
        %v567 = vsub.s32 %v564, %v566
        %v568 = vrot.slane %v560, %v567
        %v570 = vunpack.c.l.s4 1983009808
        %v571 = vunpack.c.0.s8 %v570
        %v572 = vlaneseq
        %v573 = vshrl.u32 %v572, 7
        %v574 = vsub.s32 %v571, %v573
        %v575 = vrot.slane %v561, %v574
        %v576 = vcombine.low %v568, %v575
        %v577 = vcombine.low %v338, %v345
        %v578 = vcombine.low %v352, %v359
        %v580 = vunpack.c.l.s4 1983009808
        %v581 = vunpack.c.0.s8 %v580
        %v582 = vlaneseq
        %v583 = vshrl.u32 %v582, 7
        %v584 = vsub.s32 %v581, %v583
        %v585 = vrot.slane %v577, %v584
        %v587 = vunpack.c.l.s4 1983009808
        %v588 = vunpack.c.0.s8 %v587
        %v589 = vlaneseq
        %v590 = vshrl.u32 %v589, 7
        %v591 = vsub.s32 %v588, %v590
        %v592 = vrot.slane %v578, %v591
        %v593 = vcombine.low %v585, %v592
        %v594 = vcombine.low %v366, %v373
        %v595 = vcombine.low %v380, %v387
        %v597 = vunpack.c.l.s4 1983009808
        %v598 = vunpack.c.0.s8 %v597
        %v599 = vlaneseq
        %v600 = vshrl.u32 %v599, 7
        %v601 = vsub.s32 %v598, %v600
        %v602 = vrot.slane %v594, %v601
        %v604 = vunpack.c.l.s4 1983009808
        %v605 = vunpack.c.0.s8 %v604
        %v606 = vlaneseq
        %v607 = vshrl.u32 %v606, 7
        %v608 = vsub.s32 %v605, %v607
        %v609 = vrot.slane %v595, %v608
        %v610 = vcombine.low %v602, %v609
        %v611 = vcombine.low %v394, %v401
        %v612 = vcombine.low %v408, %v415
        %v614 = vunpack.c.l.s4 1983009808
        %v615 = vunpack.c.0.s8 %v614
        %v616 = vlaneseq
        %v617 = vshrl.u32 %v616, 7
        %v618 = vsub.s32 %v615, %v617
        %v619 = vrot.slane %v611, %v618
        %v621 = vunpack.c.l.s4 1983009808
        %v622 = vunpack.c.0.s8 %v621
        %v623 = vlaneseq
        %v624 = vshrl.u32 %v623, 7
        %v625 = vsub.s32 %v622, %v624
        %v626 = vrot.slane %v612, %v625
        %v627 = vcombine.low %v619, %v626
        %v628 = vcombine.low %v422, %v429
        %v629 = vcombine.low %v436, %v443
        %v631 = vunpack.c.l.s4 1983009808
        %v632 = vunpack.c.0.s8 %v631
        %v633 = vlaneseq
        %v634 = vshrl.u32 %v633, 7
        %v635 = vsub.s32 %v632, %v634
        %v636 = vrot.slane %v628, %v635
        %v638 = vunpack.c.l.s4 1983009808
        %v639 = vunpack.c.0.s8 %v638
        %v640 = vlaneseq
        %v641 = vshrl.u32 %v640, 7
        %v642 = vsub.s32 %v639, %v641
        %v643 = vrot.slane %v629, %v642
        %v644 = vcombine.low %v636, %v643
        %v645 = vcombine.low %v450, %v457
        %v646 = vcombine.low %v464, %v471
        %v648 = vunpack.c.l.s4 1983009808
        %v649 = vunpack.c.0.s8 %v648
        %v650 = vlaneseq
        %v651 = vshrl.u32 %v650, 7
        %v652 = vsub.s32 %v649, %v651
        %v653 = vrot.slane %v645, %v652
        %v655 = vunpack.c.l.s4 1983009808
        %v656 = vunpack.c.0.s8 %v655
        %v657 = vlaneseq
        %v658 = vshrl.u32 %v657, 7
        %v659 = vsub.s32 %v656, %v658
        %v660 = vrot.slane %v646, %v659
        %v661 = vcombine.low %v653, %v660
        %v662 = vcombine.low %v478, %v485
        %v663 = vcombine.low %v492, %v499
        %v665 = vunpack.c.l.s4 1983009808
        %v666 = vunpack.c.0.s8 %v665
        %v667 = vlaneseq
        %v668 = vshrl.u32 %v667, 7
        %v669 = vsub.s32 %v666, %v668
        %v670 = vrot.slane %v662, %v669
        %v672 = vunpack.c.l.s4 1983009808
        %v673 = vunpack.c.0.s8 %v672
        %v674 = vlaneseq
        %v675 = vshrl.u32 %v674, 7
        %v676 = vsub.s32 %v673, %v675
        %v677 = vrot.slane %v663, %v676
        %v678 = vcombine.low %v670, %v677
        %v679 = vcombine.low %v506, %v513
        %v680 = vcombine.low %v520, %v527
        %v682 = vunpack.c.l.s4 1983009808
        %v683 = vunpack.c.0.s8 %v682
        %v684 = vlaneseq
        %v685 = vshrl.u32 %v684, 7
        %v686 = vsub.s32 %v683, %v685
        %v687 = vrot.slane %v679, %v686
        %v689 = vunpack.c.l.s4 1983009808
        %v690 = vunpack.c.0.s8 %v689
        %v691 = vlaneseq
        %v692 = vshrl.u32 %v691, 7
        %v693 = vsub.s32 %v690, %v692
        %v694 = vrot.slane %v680, %v693
        %v695 = vcombine.low %v687, %v694
        %vm696 = vcmask 1044484
        %v697 = vsel %vm696, %v576, %v576
        %vm698 = vcmask 1046534
        %v699 = vsel %vm698, %v576, %v697
        %v700 = vrot.slane %v644, 7
        %vm701 = vcmask 1041409
        %v702 = vsel %vm701, %v700, %v699
        %vm703 = vcmask 1043459
        %v704 = vsel %vm703, %v700, %v702
        %vm705 = vcmask 1045509
        %v706 = vsel %vm705, %v700, %v704
        %vm707 = vcmask 1047559
        %v708 = vsel %vm707, %v700, %v706
        %v709 = vsel %vm696, %v593, %v593
        %v710 = vsel %vm698, %v593, %v709
        %v711 = vrot.slane %v661, 7
        %v712 = vsel %vm701, %v711, %v710
        %v713 = vsel %vm703, %v711, %v712
        %v714 = vsel %vm705, %v711, %v713
        %v715 = vsel %vm707, %v711, %v714
        %v716 = vsel %vm696, %v610, %v610
        %v717 = vsel %vm698, %v610, %v716
        %v718 = vrot.slane %v678, 7
        %v719 = vsel %vm701, %v718, %v717
        %v720 = vsel %vm703, %v718, %v719
        %v721 = vsel %vm705, %v718, %v720
        %v722 = vsel %vm707, %v718, %v721
        %v723 = vsel %vm696, %v627, %v627
        %v724 = vsel %vm698, %v627, %v723
        %v725 = vrot.slane %v695, 7
        %v726 = vsel %vm701, %v725, %v724
        %v727 = vsel %vm703, %v725, %v726
        %v728 = vsel %vm705, %v725, %v727
        %v729 = vsel %vm707, %v725, %v728
        %734 = vst [vmem:[%s161] sm:$0xff] %v708
        %735 = vst [vmem:[%s161 + $0x8] sm:$0xff] %v715
        %736 = vst [vmem:[%s161 + $0x10] sm:$0xff] %v722
        %737 = vst [vmem:[%s161 + $0x18] sm:$0xff] %v729
        %s738 = sand.u32 %s74, 1
        %s739 = scalar_lea.sflag [#allocation4], %s738
        %s740 = sand.u32 %s74, 1
        %s741 = smul.addr %s740, 32
        %s742 = scalar_lea.vmem [#allocation5], %s741
        // Predicated region
        $region33: #{tpu_custom_call.1} parent=27 // pred_check
          %p743 = pneg %p84
        $region34: #{tpu_custom_call.1} parent=27 // pred_check_branch
          %745 = sbr.rel (%p743) target = $region36
        $region35: #{tpu_custom_call.1} parent=27 // pred_region
          %s746 = smul.u32 16, %s19
          %s748 = ssub.s32 512, 512
          %749 = vsyncadd %s739, %s748
          %s750 = smul.addr %s746, 32
          %s751 = scalar_lea.hbm %s2, %s750
          %s753 = sshll.u32 %s742, 4
          %s754 = int_to_ptr.vmem [resolvable:$true] %s753
          %756 = dma.vmem_to_hbm [thread:$0]  %s754, 512, %s751, %s739
        $region36: #{tpu_custom_call.1} parent=27 // pred_fallthru
          _
      $region28: #{tpu_custom_call.1} parent=5 // pred_fallthru
        _
      %p757 = scmp.le.s32.totalorder 2, %s14
      // Predicated region
      $region37: #{tpu_custom_call.1} parent=5 // pred_check
        %p758 = pneg %p757
      $region38: #{tpu_custom_call.1} parent=5 // pred_check_branch
        %760 = sbr.rel (%p758) target = $region40
      $region39: #{tpu_custom_call.1} parent=5 // pred_region
        %s761 = ssub.s32 %s14, 2
        // Predicated region
        $region41: #{tpu_custom_call.1} parent=39 // pred_check
          %p762 = pneg %p90
        $region42: #{tpu_custom_call.1} parent=39 // pred_check_branch
          %764 = sbr.rel (%p762) target = $region44
        $region43: #{tpu_custom_call.1} parent=39 // pred_region
          %s765 = sand.u32 %s75, 1
          %s766 = scalar_lea.sflag [#allocation4], %s765
          %s767 = sand.u32 %s75, 1
          %s768 = smul.addr %s767, 32
          %s769 = scalar_lea.vmem [#allocation5], %s768
          %770 = dma.done %s766, 512
        $region44: #{tpu_custom_call.1} parent=39 // pred_fallthru
          _
      $region40: #{tpu_custom_call.1} parent=5 // pred_fallthru
        _
    $region6: #{tpu_custom_call.1} parent=1 // loop_footer
      %s18 = sadd.s32 1, %s14
    $region7: #{tpu_custom_call.1} parent=1 // loop_footer_branch
      %13 = sbr.rel target = $region3
    $region8: #{tpu_custom_call.1} parent=1 // loop_exit
      _
    %771 = vsyncpa [#allocation3], 1
    %s772 = scalar_lea.sflag [#allocation3], 1
    %773 = vsyncpa %s772, 1
    %774 = vsyncpa [#allocation4], 1
    %s775 = scalar_lea.sflag [#allocation4], 1
    %776 = vsyncpa %s775, 1

</llo_original>
